<compile_context>
chip_gen: v7x
topology: tpu7x:2x2x1
jax: 0.10.0
libtpu: 0.0.40
codegen_flags: <defaults>
</compile_context>

<pallas_src>
import functools

import jax
import jax.numpy as jnp
from jax.experimental import pallas as pl
from jax.experimental.pallas import tpu as pltpu

LANE = 128


def _round_up(n, m):
    return ((n + m - 1) // m) * m


def _agent_fwd_kernel(xT_ref, w1_ref, b1_ref, w2_ref, b2_ref, outT_ref):
    """One batch tile of action = tanh(fc2(relu(fc1(state)))).

    Feature-major shapes (batch on the lane axis):
      xT : (S, tm)  streamed state tile
      w1 : (H, S)   fc1.weight (torch (out, in) layout), VMEM-resident
      b1 : (H, 1)
      w2 : (A, H)   fc2.weight, VMEM-resident
      b2 : (A, 1)
      out: (A, tm)  lane-dense transposed action tile
    S=4 / H=5 contractions are far too small for the MXU, so the whole MLP is
    a few VPU broadcast-FMAs with the tanh on the EUP.
    """
    xT = xT_ref[...]
    w1 = w1_ref[...]
    w2 = w2_ref[...]
    S, tm = xT.shape
    H = w1.shape[0]
    A = w2.shape[0]

    # Layer 1 (VPU): h[j, b] = relu(b1[j] + sum_k w1[j, k] * x[k, b])
    h = jnp.broadcast_to(b1_ref[...], (H, tm))
    for k in range(S):                       # S is static & tiny
        h = h + w1[:, k:k + 1] * xT[k:k + 1, :]
    h = jnp.maximum(h, 0.0)

    # Layer 2 (VPU): y[a, b] = b2[a] + sum_j w2[a, j] * h[j, b]
    y = jnp.broadcast_to(b2_ref[...], (A, tm))
    for j in range(H):                       # H is static & tiny
        y = y + w2[:, j:j + 1] * h[j:j + 1, :]

    outT_ref[...] = jnp.tanh(y).astype(outT_ref.dtype)


@functools.partial(jax.jit, static_argnames=("tm",))
def agent_forward(x, fc1_w, fc1_b, fc2_w, fc2_b, *, tm=None):
    """Batched Agent.forward: states (B, S) or (S,) -> actions in [-1, 1]."""
    squeeze = x.ndim == 1
    if squeeze:
        x = x[None, :]
    B, S = x.shape
    H = fc1_w.shape[0]
    A = fc2_w.shape[0]

    # Feature-major: batch rides the lane axis, so x tiles are contiguous
    # full-lane rows and the output store is lane-dense with no padded action
    # columns to write back or slice off afterwards.
    xT = jnp.transpose(x).astype(jnp.float32)            # (S, B)
    w1 = fc1_w.astype(jnp.float32)                        # (H, S)
    b1 = jnp.reshape(fc1_b, (H, 1)).astype(jnp.float32)
    w2 = fc2_w.astype(jnp.float32)                        # (A, H)
    b2 = jnp.reshape(fc2_b, (A, 1)).astype(jnp.float32)

    # Batch tile: lane-aligned and as large as possible while keeping >= 2
    # grid steps (v7x has 2 TensorCores; the extra step is ~0.35 us on
    # single-TC v5e/v6e).  Per-step VMEM stays in the KiB range.
    if tm is None:
        if B <= LANE:
            tm = B                                        # one (partial) block
        else:
            tm = min(4096, max(LANE, _round_up(pl.cdiv(B, 2), LANE)))
    grid = (pl.cdiv(B, tm),)                              # ragged tail is clipped

    outT = pl.pallas_call(
        _agent_fwd_kernel,
        out_shape=jax.ShapeDtypeStruct((A, B), jnp.float32),
        grid=grid,
        in_specs=[
            pl.BlockSpec((S, tm), lambda i: (0, i)),      # streamed x^T tile
            pl.BlockSpec((H, S), lambda i: (0, 0)),       # resident params
            pl.BlockSpec((H, 1), lambda i: (0, 0)),
            pl.BlockSpec((A, H), lambda i: (0, 0)),
            pl.BlockSpec((A, 1), lambda i: (0, 0)),
        ],
        out_specs=pl.BlockSpec((A, tm), lambda i: (0, i)),
        compiler_params=pltpu.CompilerParams(
            dimension_semantics=("parallel",),
        ),
    )(xT, w1, b1, w2, b2)

    out = jnp.transpose(outT)                             # (B, A)
    return out[0] if squeeze else out


if __name__ == "__main__":
    # Module-consistent sizes: 4-dim observation, hidden 5 (module default
    # h_size), 2-dim continuous action.
    S, H, A = 4, 5, 2
    B = 512

    key = jax.random.PRNGKey(0)
    kx, k1, kb1, k2, kb2 = jax.random.split(key, 5)

    x = jax.random.normal(kx, (B, S), dtype=jnp.float32)
    # Deterministic stand-ins for nn.Linear parameters, torch (out, in) layout.
    fc1_w = jax.random.normal(k1, (H, S), dtype=jnp.float32) * 0.5
    fc1_b = jax.random.normal(kb1, (H,), dtype=jnp.float32) * 0.1
    fc2_w = jax.random.normal(k2, (A, H), dtype=jnp.float32) * 0.5
    fc2_b = jax.random.normal(kb2, (A,), dtype=jnp.float32) * 0.1

    def ref_forward(xb):
        h = jnp.maximum(xb @ fc1_w.T + fc1_b, 0.0)
        return jnp.tanh(h @ fc2_w.T + fc2_b)

    # Full batch: 2 grid steps of 256 lanes each.
    out = agent_forward(x, fc1_w, fc1_b, fc2_w, fc2_b)
    jax.block_until_ready(out)
    assert out.shape == (B, A)
    assert jnp.allclose(out, ref_forward(x), atol=1e-5, rtol=1e-5)

    # Small ragged batch (< 128): single partial-lane block, no padding copy.
    out13 = agent_forward(x[:13], fc1_w, fc1_b, fc2_w, fc2_b)
    jax.block_until_ready(out13)
    assert jnp.allclose(out13, ref_forward(x[:13]), atol=1e-5, rtol=1e-5)

    # Ragged last tile with >1 grid steps (exercises clipped OOB writeback).
    out300 = agent_forward(x[:300], fc1_w, fc1_b, fc2_w, fc2_b)
    jax.block_until_ready(out300)
    assert jnp.allclose(out300, ref_forward(x[:300]), atol=1e-5, rtol=1e-5)

    # Single state, as used inside Agent.evaluate's env-step loop.
    out1 = agent_forward(x[0], fc1_w, fc1_b, fc2_w, fc2_b)
    jax.block_until_ready(out1)
    assert out1.shape == (A,)
    assert jnp.allclose(out1, ref_forward(x[:1])[0], atol=1e-5, rtol=1e-5)

    print("KERNEL_OK")
</pallas_src>

<mosaic_0001>
module attributes {stable_mosaic.version = 11 : i64} {
  func.func @_agent_fwd_kernel(%arg0: i32, %arg1: memref<4x256xf32, #tpu.memory_space<vmem>>, %arg2: memref<5x4xf32, #tpu.memory_space<vmem>>, %arg3: memref<5x1xf32, #tpu.memory_space<vmem>>, %arg4: memref<2x5xf32, #tpu.memory_space<vmem>>, %arg5: memref<2x1xf32, #tpu.memory_space<vmem>>, %arg6: memref<2x256xf32, #tpu.memory_space<vmem>>) attributes {dimension_semantics = [#tpu.dimension_semantics<parallel>], iteration_bounds = array<i64: 2>, scalar_prefetch = 0 : i64, scratch_operands = 0 : i64, tpu.core_type = #tpu.core_type<tc>, window_params = [{transform_indices = @transform_0, window_bounds = array<i64: 4, 256>}, {pipeline_mode = #tpu.pipeline_mode<synchronous>, transform_indices = @transform_1, window_bounds = array<i64: 5, 4>}, {pipeline_mode = #tpu.pipeline_mode<synchronous>, transform_indices = @transform_2, window_bounds = array<i64: 5, 1>}, {pipeline_mode = #tpu.pipeline_mode<synchronous>, transform_indices = @transform_3, window_bounds = array<i64: 2, 5>}, {pipeline_mode = #tpu.pipeline_mode<synchronous>, transform_indices = @transform_4, window_bounds = array<i64: 2, 1>}, {transform_indices = @transform_5, window_bounds = array<i64: 2, 256>}]} {
    %c0 = arith.constant 0 : index
    %c0_0 = arith.constant 0 : index
    %0 = vector.load %arg1[%c0, %c0_0] : memref<4x256xf32, #tpu.memory_space<vmem>>, vector<4x256xf32>
    %c0_1 = arith.constant 0 : index
    %c0_2 = arith.constant 0 : index
    %1 = vector.load %arg2[%c0_1, %c0_2] : memref<5x4xf32, #tpu.memory_space<vmem>>, vector<5x4xf32>
    %c0_3 = arith.constant 0 : index
    %c0_4 = arith.constant 0 : index
    %2 = vector.load %arg4[%c0_3, %c0_4] : memref<2x5xf32, #tpu.memory_space<vmem>>, vector<2x5xf32>
    %c0_5 = arith.constant 0 : index
    %c0_6 = arith.constant 0 : index
    %3 = vector.load %arg3[%c0_5, %c0_6] : memref<5x1xf32, #tpu.memory_space<vmem>>, vector<5x1xf32>
    %4 = vector.shape_cast %3 : vector<5x1xf32> to vector<5x1xf32>
    %5 = vector.broadcast %4 : vector<5x1xf32> to vector<5x256xf32>
    %6 = vector.extract_strided_slice %1 {offsets = [0, 0], sizes = [5, 1], strides = [1, 1]} : vector<5x4xf32> to vector<5x1xf32>
    %7 = vector.extract_strided_slice %0 {offsets = [0, 0], sizes = [1, 256], strides = [1, 1]} : vector<4x256xf32> to vector<1x256xf32>
    %8 = vector.broadcast %6 : vector<5x1xf32> to vector<5x256xf32>
    %9 = vector.broadcast %7 : vector<1x256xf32> to vector<5x256xf32>
    %10 = arith.mulf %8, %9 : vector<5x256xf32>
    %11 = arith.addf %5, %10 : vector<5x256xf32>
    %12 = vector.extract_strided_slice %1 {offsets = [0, 1], sizes = [5, 1], strides = [1, 1]} : vector<5x4xf32> to vector<5x1xf32>
    %13 = vector.extract_strided_slice %0 {offsets = [1, 0], sizes = [1, 256], strides = [1, 1]} : vector<4x256xf32> to vector<1x256xf32>
    %14 = vector.broadcast %12 : vector<5x1xf32> to vector<5x256xf32>
    %15 = vector.broadcast %13 : vector<1x256xf32> to vector<5x256xf32>
    %16 = arith.mulf %14, %15 : vector<5x256xf32>
    %17 = arith.addf %11, %16 : vector<5x256xf32>
    %18 = vector.extract_strided_slice %1 {offsets = [0, 2], sizes = [5, 1], strides = [1, 1]} : vector<5x4xf32> to vector<5x1xf32>
    %19 = vector.extract_strided_slice %0 {offsets = [2, 0], sizes = [1, 256], strides = [1, 1]} : vector<4x256xf32> to vector<1x256xf32>
    %20 = vector.broadcast %18 : vector<5x1xf32> to vector<5x256xf32>
    %21 = vector.broadcast %19 : vector<1x256xf32> to vector<5x256xf32>
    %22 = arith.mulf %20, %21 : vector<5x256xf32>
    %23 = arith.addf %17, %22 : vector<5x256xf32>
    %24 = vector.extract_strided_slice %1 {offsets = [0, 3], sizes = [5, 1], strides = [1, 1]} : vector<5x4xf32> to vector<5x1xf32>
    %25 = vector.extract_strided_slice %0 {offsets = [3, 0], sizes = [1, 256], strides = [1, 1]} : vector<4x256xf32> to vector<1x256xf32>
    %26 = vector.broadcast %24 : vector<5x1xf32> to vector<5x256xf32>
    %27 = vector.broadcast %25 : vector<1x256xf32> to vector<5x256xf32>
    %28 = arith.mulf %26, %27 : vector<5x256xf32>
    %29 = arith.addf %23, %28 : vector<5x256xf32>
    %cst = arith.constant 0.000000e+00 : f32
    %30 = vector.broadcast %cst : f32 to vector<5x256xf32>
    %31 = arith.maximumf %29, %30 : vector<5x256xf32>
    %c0_7 = arith.constant 0 : index
    %c0_8 = arith.constant 0 : index
    %32 = vector.load %arg5[%c0_7, %c0_8] : memref<2x1xf32, #tpu.memory_space<vmem>>, vector<2x1xf32>
    %33 = vector.shape_cast %32 : vector<2x1xf32> to vector<2x1xf32>
    %34 = vector.broadcast %33 : vector<2x1xf32> to vector<2x256xf32>
    %35 = vector.extract_strided_slice %2 {offsets = [0, 0], sizes = [2, 1], strides = [1, 1]} : vector<2x5xf32> to vector<2x1xf32>
    %36 = vector.extract_strided_slice %31 {offsets = [0, 0], sizes = [1, 256], strides = [1, 1]} : vector<5x256xf32> to vector<1x256xf32>
    %37 = vector.broadcast %35 : vector<2x1xf32> to vector<2x256xf32>
    %38 = vector.broadcast %36 : vector<1x256xf32> to vector<2x256xf32>
    %39 = arith.mulf %37, %38 : vector<2x256xf32>
    %40 = arith.addf %34, %39 : vector<2x256xf32>
    %41 = vector.extract_strided_slice %2 {offsets = [0, 1], sizes = [2, 1], strides = [1, 1]} : vector<2x5xf32> to vector<2x1xf32>
    %42 = vector.extract_strided_slice %31 {offsets = [1, 0], sizes = [1, 256], strides = [1, 1]} : vector<5x256xf32> to vector<1x256xf32>
    %43 = vector.broadcast %41 : vector<2x1xf32> to vector<2x256xf32>
    %44 = vector.broadcast %42 : vector<1x256xf32> to vector<2x256xf32>
    %45 = arith.mulf %43, %44 : vector<2x256xf32>
    %46 = arith.addf %40, %45 : vector<2x256xf32>
    %47 = vector.extract_strided_slice %2 {offsets = [0, 2], sizes = [2, 1], strides = [1, 1]} : vector<2x5xf32> to vector<2x1xf32>
    %48 = vector.extract_strided_slice %31 {offsets = [2, 0], sizes = [1, 256], strides = [1, 1]} : vector<5x256xf32> to vector<1x256xf32>
    %49 = vector.broadcast %47 : vector<2x1xf32> to vector<2x256xf32>
    %50 = vector.broadcast %48 : vector<1x256xf32> to vector<2x256xf32>
    %51 = arith.mulf %49, %50 : vector<2x256xf32>
    %52 = arith.addf %46, %51 : vector<2x256xf32>
    %53 = vector.extract_strided_slice %2 {offsets = [0, 3], sizes = [2, 1], strides = [1, 1]} : vector<2x5xf32> to vector<2x1xf32>
    %54 = vector.extract_strided_slice %31 {offsets = [3, 0], sizes = [1, 256], strides = [1, 1]} : vector<5x256xf32> to vector<1x256xf32>
    %55 = vector.broadcast %53 : vector<2x1xf32> to vector<2x256xf32>
    %56 = vector.broadcast %54 : vector<1x256xf32> to vector<2x256xf32>
    %57 = arith.mulf %55, %56 : vector<2x256xf32>
    %58 = arith.addf %52, %57 : vector<2x256xf32>
    %59 = vector.extract_strided_slice %2 {offsets = [0, 4], sizes = [2, 1], strides = [1, 1]} : vector<2x5xf32> to vector<2x1xf32>
    %60 = vector.extract_strided_slice %31 {offsets = [4, 0], sizes = [1, 256], strides = [1, 1]} : vector<5x256xf32> to vector<1x256xf32>
    %61 = vector.broadcast %59 : vector<2x1xf32> to vector<2x256xf32>
    %62 = vector.broadcast %60 : vector<1x256xf32> to vector<2x256xf32>
    %63 = arith.mulf %61, %62 : vector<2x256xf32>
    %64 = arith.addf %58, %63 : vector<2x256xf32>
    %65 = math.tanh %64 : vector<2x256xf32>
    %c0_9 = arith.constant 0 : index
    %c0_10 = arith.constant 0 : index
    %66 = vector.load %arg6[%c0_9, %c0_10] : memref<2x256xf32, #tpu.memory_space<vmem>>, vector<2x256xf32>
    tpu.vector_store %arg6[%c0_9, %c0_10], %65 {strides = array<i32>} : memref<2x256xf32, #tpu.memory_space<vmem>>, vector<2x256xf32>,
    return
  }
  func.func @transform_0(%arg0: i32) -> (i32, i32) {
    %c0_i32 = arith.constant 0 : i32
    %c0_i32_0 = arith.constant 0 : i32
    return %c0_i32, %arg0 : i32, i32
  }
  func.func @transform_1(%arg0: i32) -> (i32, i32) {
    %c0_i32 = arith.constant 0 : i32
    %c0_i32_0 = arith.constant 0 : i32
    %c0_i32_1 = arith.constant 0 : i32
    return %c0_i32, %c0_i32_0 : i32, i32
  }
  func.func @transform_2(%arg0: i32) -> (i32, i32) {
    %c0_i32 = arith.constant 0 : i32
    %c0_i32_0 = arith.constant 0 : i32
    %c0_i32_1 = arith.constant 0 : i32
    return %c0_i32, %c0_i32_0 : i32, i32
  }
  func.func @transform_3(%arg0: i32) -> (i32, i32) {
    %c0_i32 = arith.constant 0 : i32
    %c0_i32_0 = arith.constant 0 : i32
    %c0_i32_1 = arith.constant 0 : i32
    return %c0_i32, %c0_i32_0 : i32, i32
  }
  func.func @transform_4(%arg0: i32) -> (i32, i32) {
    %c0_i32 = arith.constant 0 : i32
    %c0_i32_0 = arith.constant 0 : i32
    %c0_i32_1 = arith.constant 0 : i32
    return %c0_i32, %c0_i32_0 : i32, i32
  }
  func.func @transform_5(%arg0: i32) -> (i32, i32) {
    %c0_i32 = arith.constant 0 : i32
    %c0_i32_0 = arith.constant 0 : i32
    return %c0_i32, %arg0 : i32, i32
  }
}

</mosaic_0001>

<llo_original>
// kernel: agent_forward.1
$region0: #{agent_forward.1}
  #allocation0 [shape = 'u32[]', space=smem, size = 0x4, offset = 0x4, fixed_abs, tag = 'smem constant byte address 0x4 - core index']
  #allocation1 [shape = 'u32[144,128]{1,0:T(1,128)}', space=vmem, size = 0x12000, scoped, tag = 'internal scratch']
  %s0 = inlined_call_operand.vmem [shape: f32[4,512], index: 0, kind: input, shape index: {}]
  %s1 = inlined_call_operand.vmem [shape: f32[5,4], index: 1, kind: input, shape index: {}]
  %s2 = inlined_call_operand.vmem [shape: f32[5,1], index: 2, kind: input, shape index: {}]
  %s3 = inlined_call_operand.vmem [shape: f32[2,5], index: 3, kind: input, shape index: {}]
  %s4 = inlined_call_operand.vmem [shape: f32[2,1], index: 4, kind: input, shape index: {}]
  %s5 = inlined_call_operand.hbm [shape: f32[2,512], index: 5, kind: output, shape index: {}]
  %s6 = sld [smem:[#allocation0]]
  $region53: #{agent_forward.1} parent=0
    _
  %s8 = ssub.s32 1, %s6
  %s9 = scalar_select 0, %s8, %s6
  $region1: #{agent_forward.1} parent=0
    #allocation2 [shape = 'u8[4096]{0}', space=vmem, size = 0x1000, scoped, tag = 'output window, operand 0']
    #allocation3 [shape = 's32[2]{0}', space=sflag, size = 0x8, scoped, tag = 'scoped memory for agent_forward.1']
    %10 = vsyncpa [#allocation3], 0
    %s11 = scalar_lea.sflag [#allocation3], 1
    %12 = vsyncpa %s11, 0
    loop: start=0, step=1, limit=4
    $region2: #{agent_forward.1} parent=1 // loop_pre_header
      _
    $region3: #{agent_forward.1} parent=1 // loop_header
      %s14 = sphi 0, %s18
      %p15 = scmp.ge.s32.totalorder %s14, 4
      %s24 = sphi 0, %s26
      %s27 = sphi 0, %s24
      %s28 = sphi 0, %s27
      %s44 = sphi 0, %s28
      %s48 = sphi 0, %s48
      %s50 = sphi 0, %s48
      %s51 = sphi 0, %s50
      %s65 = sphi 0, %s51
      %s69 = sphi 0, %s69
      %s71 = sphi 0, %s69
      %s72 = sphi 0, %s71
      %s86 = sphi 0, %s72
      %s90 = sphi 0, %s90
      %s92 = sphi 0, %s90
      %s93 = sphi 0, %s92
      %s107 = sphi 0, %s93
      %s111 = sphi 0, %s111
      %s113 = sphi 0, %s111
      %s114 = sphi 0, %s113
      %s128 = sphi 0, %s114
      %s134 = sphi 0, %s136
      %s137 = sphi 0, %s134
      %s138 = sphi 0, %s137
      %s154 = sphi 0, %s138
    $region4: #{agent_forward.1} parent=1 // loop_header_branch
      %17 = sbr.rel (%p15) target = $region8
    $region5: #{agent_forward.1} parent=1 // loop_body
      %s19 = ssub.s32 %s14, 1
      %s20 = ssub.s32 %s14, 2
      %s21 = sadd.s32 %s14, 1
      %s22 = ssub.s32 %s14, %s21
      %p23 = scmp.eq.s32.totalorder %s22, 0
      %s25 = sadd.s32 %s24, 1
      %s26 = scalar_select %p23, %s24, %s25
      %p29 = pneg %p23
      %p30 = scmp.eq.s32.totalorder %s14, 1
      %p31 = por %p29, %p30
      %p32 = scmp.ne.s32.totalorder %s24, %s27
      %p33 = scmp.eq.s32.totalorder %s14, 0
      %p34 = por %p32, %p33
      %p35 = scmp.ne.s32.totalorder %s24, %s27
      %p36 = scmp.eq.s32.totalorder %s19, 1
      %p37 = por %p35, %p36
      %p38 = scmp.ne.s32.totalorder %s27, %s28
      %p39 = scmp.eq.s32.totalorder %s19, 0
      %p40 = por %p38, %p39
      %p41 = scmp.ne.s32.totalorder %s27, %s28
      %p42 = scmp.eq.s32.totalorder %s20, 1
      %p43 = por %p41, %p42
      %p45 = scmp.ne.s32.totalorder %s28, %s44
      %p46 = scmp.eq.s32.totalorder %s20, 0
      %p47 = por %p45, %p46
      %s49 = sadd.s32 %s48, 1
      %p52 = scmp.eq.s32.totalorder %s14, 1
      %p53 = scmp.ne.s32.totalorder %s48, %s50
      %p54 = scmp.eq.s32.totalorder %s14, 0
      %p55 = por %p53, %p54
      %p56 = scmp.ne.s32.totalorder %s48, %s50
      %p57 = scmp.eq.s32.totalorder %s19, 1
      %p58 = por %p56, %p57
      %p59 = scmp.ne.s32.totalorder %s50, %s51
      %p60 = scmp.eq.s32.totalorder %s19, 0
      %p61 = por %p59, %p60
      %p62 = scmp.ne.s32.totalorder %s50, %s51
      %p63 = scmp.eq.s32.totalorder %s20, 1
      %p64 = por %p62, %p63
      %p66 = scmp.ne.s32.totalorder %s51, %s65
      %p67 = scmp.eq.s32.totalorder %s20, 0
      %p68 = por %p66, %p67
      %s70 = sadd.s32 %s69, 1
      %p73 = scmp.eq.s32.totalorder %s14, 1
      %p74 = scmp.ne.s32.totalorder %s69, %s71
      %p75 = scmp.eq.s32.totalorder %s14, 0
      %p76 = por %p74, %p75
      %p77 = scmp.ne.s32.totalorder %s69, %s71
      %p78 = scmp.eq.s32.totalorder %s19, 1
      %p79 = por %p77, %p78
      %p80 = scmp.ne.s32.totalorder %s71, %s72
      %p81 = scmp.eq.s32.totalorder %s19, 0
      %p82 = por %p80, %p81
      %p83 = scmp.ne.s32.totalorder %s71, %s72
      %p84 = scmp.eq.s32.totalorder %s20, 1
      %p85 = por %p83, %p84
      %p87 = scmp.ne.s32.totalorder %s72, %s86
      %p88 = scmp.eq.s32.totalorder %s20, 0
      %p89 = por %p87, %p88
      %s91 = sadd.s32 %s90, 1
      %p94 = scmp.eq.s32.totalorder %s14, 1
      %p95 = scmp.ne.s32.totalorder %s90, %s92
      %p96 = scmp.eq.s32.totalorder %s14, 0
      %p97 = por %p95, %p96
      %p98 = scmp.ne.s32.totalorder %s90, %s92
      %p99 = scmp.eq.s32.totalorder %s19, 1
      %p100 = por %p98, %p99
      %p101 = scmp.ne.s32.totalorder %s92, %s93
      %p102 = scmp.eq.s32.totalorder %s19, 0
      %p103 = por %p101, %p102
      %p104 = scmp.ne.s32.totalorder %s92, %s93
      %p105 = scmp.eq.s32.totalorder %s20, 1
      %p106 = por %p104, %p105
      %p108 = scmp.ne.s32.totalorder %s93, %s107
      %p109 = scmp.eq.s32.totalorder %s20, 0
      %p110 = por %p108, %p109
      %s112 = sadd.s32 %s111, 1
      %p115 = scmp.eq.s32.totalorder %s14, 1
      %p116 = scmp.ne.s32.totalorder %s111, %s113
      %p117 = scmp.eq.s32.totalorder %s14, 0
      %p118 = por %p116, %p117
      %p119 = scmp.ne.s32.totalorder %s111, %s113
      %p120 = scmp.eq.s32.totalorder %s19, 1
      %p121 = por %p119, %p120
      %p122 = scmp.ne.s32.totalorder %s113, %s114
      %p123 = scmp.eq.s32.totalorder %s19, 0
      %p124 = por %p122, %p123
      %p125 = scmp.ne.s32.totalorder %s113, %s114
      %p126 = scmp.eq.s32.totalorder %s20, 1
      %p127 = por %p125, %p126
      %p129 = scmp.ne.s32.totalorder %s114, %s128
      %p130 = scmp.eq.s32.totalorder %s20, 0
      %p131 = por %p129, %p130
      %s132 = ssub.s32 %s14, %s21
      %p133 = scmp.eq.s32.totalorder %s132, 0
      %s135 = sadd.s32 %s134, 1
      %s136 = scalar_select %p133, %s134, %s135
      %p139 = pneg %p133
      %p140 = scmp.eq.s32.totalorder %s14, 1
      %p141 = por %p139, %p140
      %p142 = scmp.ne.s32.totalorder %s134, %s137
      %p143 = scmp.eq.s32.totalorder %s14, 0
      %p144 = por %p142, %p143
      %p145 = scmp.ne.s32.totalorder %s134, %s137
      %p146 = scmp.eq.s32.totalorder %s19, 1
      %p147 = por %p145, %p146
      %p148 = scmp.ne.s32.totalorder %s137, %s138
      %p149 = scmp.eq.s32.totalorder %s19, 0
      %p150 = por %p148, %p149
      %p151 = scmp.ne.s32.totalorder %s137, %s138
      %p152 = scmp.eq.s32.totalorder %s20, 1
      %p153 = por %p151, %p152
      %p155 = scmp.ne.s32.totalorder %s138, %s154
      %p156 = scmp.eq.s32.totalorder %s20, 0
      %p157 = por %p155, %p156
      %p158 = scmp.le.s32.totalorder 1, %s14
      %p159 = scmp.lt.s32.totalorder %s14, 3
      %p160 = pnand %p158, %p159
      %p161 = pneg %p160
      // Predicated region
      $region9: #{agent_forward.1} parent=5 // pred_check
        _
      $region10: #{agent_forward.1} parent=5 // pred_check_branch
        %163 = sbr.rel (%p160) target = $region12
      $region11: #{agent_forward.1} parent=5 // pred_region
        %s164 = ssub.s32 %s14, 1
        // Predicated region
        $region13: #{agent_forward.1} parent=11 // pred_check
          %p165 = pneg %p61
        $region14: #{agent_forward.1} parent=11 // pred_check_branch
          %167 = sbr.rel (%p165) target = $region16
        $region15: #{agent_forward.1} parent=11 // pred_region
          _
        $region16: #{agent_forward.1} parent=11 // pred_fallthru
          _
        // Predicated region
        $region17: #{agent_forward.1} parent=11 // pred_check
          %p168 = pneg %p82
        $region18: #{agent_forward.1} parent=11 // pred_check_branch
          %170 = sbr.rel (%p168) target = $region20
        $region19: #{agent_forward.1} parent=11 // pred_region
          _
        $region20: #{agent_forward.1} parent=11 // pred_fallthru
          _
        // Predicated region
        $region21: #{agent_forward.1} parent=11 // pred_check
          %p171 = pneg %p103
        $region22: #{agent_forward.1} parent=11 // pred_check_branch
          %173 = sbr.rel (%p171) target = $region24
        $region23: #{agent_forward.1} parent=11 // pred_region
          _
        $region24: #{agent_forward.1} parent=11 // pred_fallthru
          _
        // Predicated region
        $region25: #{agent_forward.1} parent=11 // pred_check
          %p174 = pneg %p124
        $region26: #{agent_forward.1} parent=11 // pred_check_branch
          %176 = sbr.rel (%p174) target = $region28
        $region27: #{agent_forward.1} parent=11 // pred_region
          _
        $region28: #{agent_forward.1} parent=11 // pred_fallthru
          _
      $region12: #{agent_forward.1} parent=5 // pred_fallthru
        _
      %p177 = scmp.lt.s32.totalorder %s14, 2
      // Predicated region
      $region29: #{agent_forward.1} parent=5 // pred_check
        %p178 = pneg %p177
      $region30: #{agent_forward.1} parent=5 // pred_check_branch
        %180 = sbr.rel (%p178) target = $region32
      $region31: #{agent_forward.1} parent=5 // pred_region
        // Predicated region
        $region33: #{agent_forward.1} parent=31 // pred_check
          %p181 = pneg %p34
        $region34: #{agent_forward.1} parent=31 // pred_check_branch
          %183 = sbr.rel (%p181) target = $region36
        $region35: #{agent_forward.1} parent=31 // pred_region
          %s184 = smul.u32 2, %s14
          %p185 = scmp.lt.s32.totalorder %s184, 3
          %s186 = scalar_select %p185, %s184, 3
          %s187 = smul.addr %s186, 4
          %s188 = scalar_lea.vmem %s0, %s187
          %s189 = smul.u32 2, %s14
        $region36: #{agent_forward.1} parent=31 // pred_fallthru
          _
      $region32: #{agent_forward.1} parent=5 // pred_fallthru
        _
      %p190 = scmp.le.s32.totalorder 1, %s14
      %p191 = scmp.lt.s32.totalorder %s14, 3
      %p192 = pnand %p190, %p191
      %p193 = pneg %p192
      // Predicated region
      $region37: #{agent_forward.1} parent=5 // pred_check
        _
      $region38: #{agent_forward.1} parent=5 // pred_check_branch
        %195 = sbr.rel (%p192) target = $region40
      $region39: #{agent_forward.1} parent=5 // pred_region
        %s196 = ssub.s32 %s14, 1
        %s197 = smul.u32 2, %s19
        %p198 = scmp.lt.s32.totalorder %s197, 3
        %s199 = scalar_select %p198, %s197, 3
        %s200 = smul.addr %s199, 4
        %s201 = scalar_lea.vmem %s0, %s200
        %p202 = pneg %p40
        %p203 = pneg %p37
        %p204 = pneg %p61
        %p205 = pneg %p58
        %p206 = pneg %p82
        %p207 = pneg %p79
        %p208 = pneg %p103
        %p209 = pneg %p100
        %p210 = pneg %p124
        %p211 = pneg %p121
        %p212 = pneg %p150
        %p213 = pneg %p147
        %s214 = sand.u32 %s137, 1
        %s215 = scalar_lea.sflag [#allocation3], %s214
        %s216 = sand.u32 %s137, 1
        %s217 = smul.addr %s216, 4
        %s218 = scalar_lea.vmem [#allocation2], %s217
        %s219 = smul.u32 2, %s19
        %p220 = scmp.lt.s32.totalorder %s219, 3
        %s221 = scalar_select %p220, %s219, 3
        %s222 = smul.addr %s221, 4
        %s223 = scalar_lea.vmem %s0, %s222
        %s224 = smul.u32 2, %s19
        %s225 = smul.u32 2, %s19
        %v226 = vld [vmem:[%s223] sm:$0xff]
        %v227 = vld [vmem:[%s1] sm:$0x1f]
        %v228 = vld [vmem:[%s3] sm:$0x3]
        %v229 = vld [vmem:[%s2] sm:$0x1f]
        %231 = vset.pattern.permute.xlu0 0
        %232 = vperm.xlu0 %231, %v229
        %v233 = vpop.permute.xlu0 %232
        %236 = vset.pattern.permute.xlu0 0
        %237 = vperm.xlu0 %236, %v227
        %v238 = vpop.permute.xlu0 %237
        %v241 = vlaneseq
        %v242 = vshrl.u32 %v241, 7
        %v243 = vsub.s32 0, %v242
        %v244 = vrot.slane %v226, %v243
        %v245 = vlaneseq
        %v246 = vshrl.u32 %v245, 7
        %v247 = vsub.s32 4, %v246
        %v248 = vrot.slane %v226, %v247
        %v251 = vlaneseq
        %v252 = vshrl.u32 %v251, 7
        %v253 = vsub.s32 0, %v252
        %v254 = vrot.slane %v244, %v253
        %v255 = vlaneseq
        %v256 = vshrl.u32 %v255, 7
        %v257 = vsub.s32 0, %v256
        %v258 = vrot.slane %v248, %v257
        %v259 = vmul.f32 %v238, %v254
        %v260 = vmul.f32 %v238, %v258
        %v261 = vadd.f32 %v233, %v259
        %v262 = vadd.f32 %v233, %v260
        %263 = vset.pattern.permute.xlu0 1
        %264 = vperm.xlu0 %263, %v227
        %v265 = vpop.permute.xlu0 %264
        %v267 = vlaneseq
        %v268 = vshrl.u32 %v267, 7
        %v269 = vsub.s32 1, %v268
        %v270 = vrot.slane %v226, %v269
        %v271 = vlaneseq
        %v272 = vshrl.u32 %v271, 7
        %v273 = vsub.s32 5, %v272
        %v274 = vrot.slane %v226, %v273
        %v277 = vlaneseq
        %v278 = vshrl.u32 %v277, 7
        %v279 = vsub.s32 1, %v278
        %v280 = vrot.slane %v270, %v279
        %v281 = vlaneseq
        %v282 = vshrl.u32 %v281, 7
        %v283 = vsub.s32 1, %v282
        %v284 = vrot.slane %v274, %v283
        %v285 = vmul.f32 %v265, %v280
        %v286 = vmul.f32 %v265, %v284
        %v287 = vadd.f32 %v261, %v285
        %v288 = vadd.f32 %v262, %v286
        %289 = vset.pattern.permute.xlu0 2
        %290 = vperm.xlu0 %289, %v227
        %v291 = vpop.permute.xlu0 %290
        %v293 = vlaneseq
        %v294 = vshrl.u32 %v293, 7
        %v295 = vsub.s32 2, %v294
        %v296 = vrot.slane %v226, %v295
        %v297 = vlaneseq
        %v298 = vshrl.u32 %v297, 7
        %v299 = vsub.s32 6, %v298
        %v300 = vrot.slane %v226, %v299
        %v303 = vlaneseq
        %v304 = vshrl.u32 %v303, 7
        %v305 = vsub.s32 2, %v304
        %v306 = vrot.slane %v296, %v305
        %v307 = vlaneseq
        %v308 = vshrl.u32 %v307, 7
        %v309 = vsub.s32 2, %v308
        %v310 = vrot.slane %v300, %v309
        %v311 = vmul.f32 %v291, %v306
        %v312 = vmul.f32 %v291, %v310
        %v313 = vadd.f32 %v287, %v311
        %v314 = vadd.f32 %v288, %v312
        %315 = vset.pattern.permute.xlu0 3
        %316 = vperm.xlu0 %315, %v227
        %v317 = vpop.permute.xlu0 %316
        %v319 = vlaneseq
        %v320 = vshrl.u32 %v319, 7
        %v321 = vsub.s32 3, %v320
        %v322 = vrot.slane %v226, %v321
        %v323 = vlaneseq
        %v324 = vshrl.u32 %v323, 7
        %v325 = vsub.s32 7, %v324
        %v326 = vrot.slane %v226, %v325
        %v329 = vlaneseq
        %v330 = vshrl.u32 %v329, 7
        %v331 = vsub.s32 3, %v330
        %v332 = vrot.slane %v322, %v331
        %v333 = vlaneseq
        %v334 = vshrl.u32 %v333, 7
        %v335 = vsub.s32 3, %v334
        %v336 = vrot.slane %v326, %v335
        %v337 = vmul.f32 %v317, %v332
        %v338 = vmul.f32 %v317, %v336
        %v339 = vadd.f32 %v313, %v337
        %v340 = vadd.f32 %v314, %v338
        %v341 = vmax.f32 %v339, 0.0
        %v342 = vmax.f32 %v340, 0.0
        %v343 = vld [vmem:[%s4] sm:$0x3]
        %345 = vset.pattern.permute.xlu0 0
        %346 = vperm.xlu0 %345, %v343
        %v347 = vpop.permute.xlu0 %346
        %350 = vset.pattern.permute.xlu0 0
        %351 = vperm.xlu0 %350, %v228
        %v352 = vpop.permute.xlu0 %351
        %v354 = vlaneseq
        %v355 = vshrl.u32 %v354, 7
        %v356 = vsub.s32 0, %v355
        %v357 = vrot.slane %v341, %v356
        %v358 = vlaneseq
        %v359 = vshrl.u32 %v358, 7
        %v360 = vsub.s32 0, %v359
        %v361 = vrot.slane %v342, %v360
        %v362 = vmul.f32 %v352, %v357
        %v363 = vmul.f32 %v352, %v361
        %v364 = vadd.f32 %v347, %v362
        %v365 = vadd.f32 %v347, %v363
        %366 = vset.pattern.permute.xlu0 1
        %367 = vperm.xlu0 %366, %v228
        %v368 = vpop.permute.xlu0 %367
        %v370 = vlaneseq
        %v371 = vshrl.u32 %v370, 7
        %v372 = vsub.s32 1, %v371
        %v373 = vrot.slane %v341, %v372
        %v374 = vlaneseq
        %v375 = vshrl.u32 %v374, 7
        %v376 = vsub.s32 1, %v375
        %v377 = vrot.slane %v342, %v376
        %v378 = vmul.f32 %v368, %v373
        %v379 = vmul.f32 %v368, %v377
        %v380 = vadd.f32 %v364, %v378
        %v381 = vadd.f32 %v365, %v379
        %382 = vset.pattern.permute.xlu0 2
        %383 = vperm.xlu0 %382, %v228
        %v384 = vpop.permute.xlu0 %383
        %v386 = vlaneseq
        %v387 = vshrl.u32 %v386, 7
        %v388 = vsub.s32 2, %v387
        %v389 = vrot.slane %v341, %v388
        %v390 = vlaneseq
        %v391 = vshrl.u32 %v390, 7
        %v392 = vsub.s32 2, %v391
        %v393 = vrot.slane %v342, %v392
        %v394 = vmul.f32 %v384, %v389
        %v395 = vmul.f32 %v384, %v393
        %v396 = vadd.f32 %v380, %v394
        %v397 = vadd.f32 %v381, %v395
        %398 = vset.pattern.permute.xlu0 3
        %399 = vperm.xlu0 %398, %v228
        %v400 = vpop.permute.xlu0 %399
        %v402 = vlaneseq
        %v403 = vshrl.u32 %v402, 7
        %v404 = vsub.s32 3, %v403
        %v405 = vrot.slane %v341, %v404
        %v406 = vlaneseq
        %v407 = vshrl.u32 %v406, 7
        %v408 = vsub.s32 3, %v407
        %v409 = vrot.slane %v342, %v408
        %v410 = vmul.f32 %v400, %v405
        %v411 = vmul.f32 %v400, %v409
        %v412 = vadd.f32 %v396, %v410
        %v413 = vadd.f32 %v397, %v411
        %414 = vset.pattern.permute.xlu0 4
        %415 = vperm.xlu0 %414, %v228
        %v416 = vpop.permute.xlu0 %415
        %v418 = vlaneseq
        %v419 = vshrl.u32 %v418, 7
        %v420 = vsub.s32 4, %v419
        %v421 = vrot.slane %v341, %v420
        %v422 = vlaneseq
        %v423 = vshrl.u32 %v422, 7
        %v424 = vsub.s32 4, %v423
        %v425 = vrot.slane %v342, %v424
        %v426 = vmul.f32 %v416, %v421
        %v427 = vmul.f32 %v416, %v425
        %v428 = vadd.f32 %v412, %v426
        %v429 = vadd.f32 %v413, %v427
        %v430 = vtanh.pop %v428
        %v431 = vtanh.pop %v429
        %v434 = vcombine.low %v430, %v431
        %v436 = vunpack.c.l.s4 1983009808
        %v437 = vunpack.c.0.s8 %v436
        %v438 = vlaneseq
        %v439 = vshrl.u32 %v438, 7
        %v440 = vsub.s32 %v437, %v439
        %v441 = vrot.slane %v434, %v440
        %443 = vst [vmem:[%s218] sm:$0xf] %v441
        %s444 = sand.u32 %s137, 1
        %s445 = scalar_lea.sflag [#allocation3], %s444
        %s446 = sand.u32 %s137, 1
        %s447 = smul.addr %s446, 4
        %s448 = scalar_lea.vmem [#allocation2], %s447
        // Predicated region
        $region41: #{agent_forward.1} parent=39 // pred_check
          %p449 = pneg %p147
        $region42: #{agent_forward.1} parent=39 // pred_check_branch
          %451 = sbr.rel (%p449) target = $region44
        $region43: #{agent_forward.1} parent=39 // pred_region
          %s452 = smul.u32 2, %s19
          %s454 = ssub.s32 64, 64
          %455 = vsyncadd %s445, %s454
          %s456 = smul.addr %s452, 32
          %s457 = scalar_lea.hbm %s5, %s456
          %s459 = sshll.u32 %s448, 4
          %s460 = int_to_ptr.vmem [resolvable:$true] %s459
          %462 = dma.vmem_to_hbm [thread:$0]  %s460, 64, %s457, %s445
        $region44: #{agent_forward.1} parent=39 // pred_fallthru
          _
      $region40: #{agent_forward.1} parent=5 // pred_fallthru
        _
      %p463 = scmp.le.s32.totalorder 2, %s14
      // Predicated region
      $region45: #{agent_forward.1} parent=5 // pred_check
        %p464 = pneg %p463
      $region46: #{agent_forward.1} parent=5 // pred_check_branch
        %466 = sbr.rel (%p464) target = $region48
      $region47: #{agent_forward.1} parent=5 // pred_region
        %s467 = ssub.s32 %s14, 2
        // Predicated region
        $region49: #{agent_forward.1} parent=47 // pred_check
          %p468 = pneg %p153
        $region50: #{agent_forward.1} parent=47 // pred_check_branch
          %470 = sbr.rel (%p468) target = $region52
        $region51: #{agent_forward.1} parent=47 // pred_region
          %s471 = sand.u32 %s138, 1
          %s472 = scalar_lea.sflag [#allocation3], %s471
          %s473 = sand.u32 %s138, 1
          %s474 = smul.addr %s473, 4
          %s475 = scalar_lea.vmem [#allocation2], %s474
          %476 = dma.done %s472, 64
        $region52: #{agent_forward.1} parent=47 // pred_fallthru
          _
      $region48: #{agent_forward.1} parent=5 // pred_fallthru
        _
    $region6: #{agent_forward.1} parent=1 // loop_footer
      %s18 = sadd.s32 1, %s14
    $region7: #{agent_forward.1} parent=1 // loop_footer_branch
      %13 = sbr.rel target = $region3
    $region8: #{agent_forward.1} parent=1 // loop_exit
      _
    %477 = vsyncpa [#allocation3], 1
    %s478 = scalar_lea.sflag [#allocation3], 1
    %479 = vsyncpa %s478, 1

</llo_original>
